<compile_context>
chip_gen: v6e
topology: v6e:2x2x1
jax: 0.10.0
libtpu: 0.0.40
codegen_flags: <defaults>
</compile_context>

<pallas_src>
import functools

import jax
import jax.numpy as jnp
from jax.experimental import pallas as pl
from jax.experimental.pallas import tpu as pltpu


def qjoint_kernel(ha_ref, state_ref,
                  w1_ref, w2_ref, wq1s_ref, wq1e_ref, wq2_ref, wq3_ref,
                  bias_ref, q_ref, *, n_agents, qjoint_dim, ae_dim):
    d, ae = qjoint_dim, ae_dim

    # Biases packed into one (8, 128) f32 tile: rows = [b1, b2, bq1, bq2, bq3].
    b1 = bias_ref[0:1, 0:d]
    b2 = bias_ref[1:2, 0:ae]
    bq1 = bias_ref[2:3, 0:d]
    bq2 = bias_ref[3:4, 0:d]
    bq3 = bias_ref[4:5, 0:1]

    w1 = w1_ref[...]          # (ae, d)  bf16
    w2 = w2_ref[...]          # (d, ae)  bf16

    # --- hidden_action_encoding per agent, summed over agents ---------------
    # (N unrolled VPU adds over the leading agent axis; replaces the dense
    #  block-summation matmul.)
    def agent_encoding(n):
        x = ha_ref[n]                                         # (tile, ae) bf16
        h1 = jnp.dot(x, w1, preferred_element_type=jnp.float32) + b1
        h1 = jnp.maximum(h1, 0.0).astype(w1.dtype)
        return jnp.dot(h1, w2, preferred_element_type=jnp.float32)

    enc_sum = agent_encoding(0)
    for n in range(1, n_agents):
        enc_sum = enc_sum + agent_encoding(n)
    # Each per-agent encoding carries +b2 in the reference; the sum gets N*b2.
    enc_sum = enc_sum + float(n_agents) * b2                  # (tile, ae) f32

    # --- q head: cat([state, enc_sum]) @ Wq1 folded into two matmuls --------
    z = (jnp.dot(state_ref[...], wq1s_ref[...],
                 preferred_element_type=jnp.float32)
         + jnp.dot(enc_sum.astype(wq1e_ref.dtype), wq1e_ref[...],
                   preferred_element_type=jnp.float32)
         + bq1)
    z = jnp.maximum(z, 0.0).astype(wq2_ref.dtype)
    z = jnp.dot(z, wq2_ref[...], preferred_element_type=jnp.float32) + bq2
    z = jnp.maximum(z, 0.0)

    # Final (d -> 1) layer on the VPU/XLU: elementwise mul + lane reduce,
    # avoiding an MXU matmul whose result width would be 1/128 utilized.
    q = jnp.sum(z * wq3_ref[...], axis=-1, keepdims=True) + bq3
    q_ref[...] = q


def qjoint_forward(state, hidden, actions, params, *, tile_rows=512):
    E, T, N, A = actions.shape
    R = hidden.shape[-1]
    S = state.shape[-1]
    ET = E * T
    F = R + A
    D = params["w1"].shape[1]

    # Fold torch's cat([hidden, actions], -1) into the input re-layout and put
    # the agent axis first so the in-kernel agent sum is N leading-axis adds.
    ha = jnp.concatenate([hidden, actions], axis=-1)          # (E, T, N, F)
    ha = jnp.moveaxis(ha.reshape(ET, N, F), 1, 0)             # (N, ET, F)
    ha = ha.astype(jnp.bfloat16)
    state2d = state.reshape(ET, S).astype(jnp.bfloat16)

    # bf16 weights (MXU path); biases and the final-layer row stay f32 (VPU).
    w1 = params["w1"].astype(jnp.bfloat16)
    w2 = params["w2"].astype(jnp.bfloat16)
    wq1s = params["wq1s"].astype(jnp.bfloat16)
    wq1e = params["wq1e"].astype(jnp.bfloat16)
    wq2 = params["wq2"].astype(jnp.bfloat16)
    wq3_row = params["wq3"].reshape(1, D).astype(jnp.float32)

    bias_pack = jnp.zeros((8, 128), jnp.float32)
    bias_pack = bias_pack.at[0, :D].set(params["b1"].reshape(-1))
    bias_pack = bias_pack.at[1, :F].set(params["b2"].reshape(-1))
    bias_pack = bias_pack.at[2, :D].set(params["bq1"].reshape(-1))
    bias_pack = bias_pack.at[3, :D].set(params["bq2"].reshape(-1))
    bias_pack = bias_pack.at[4, :1].set(params["bq3"].reshape(-1))

    # Row tiling over the ET (episode*time) axis; weights stay resident.
    tile = min(tile_rows, ET)
    if tile != ET and tile % 8 != 0:
        tile = max(8, (tile // 8) * 8)
    grid = (pl.cdiv(ET, tile),)

    kernel = functools.partial(
        qjoint_kernel, n_agents=N, qjoint_dim=D, ae_dim=F)

    def fixed(shape):
        ndim = len(shape)
        return pl.BlockSpec(shape, lambda *_: (0,) * ndim)

    q = pl.pallas_call(
        kernel,
        out_shape=jax.ShapeDtypeStruct((ET, 1), jnp.float32),
        grid=grid,
        in_specs=[
            pl.BlockSpec((N, tile, F), lambda i: (0, i, 0)),   # hidden||actions
            pl.BlockSpec((tile, S), lambda i: (i, 0)),         # state
            fixed((F, D)),          # w1
            fixed((D, F)),          # w2
            fixed((S, D)),          # wq1 (state rows)
            fixed((F, D)),          # wq1 (encoding rows)
            fixed((D, D)),          # wq2
            fixed((1, D)),          # wq3 as a row (VPU)
            fixed((8, 128)),        # packed biases
        ],
        out_specs=pl.BlockSpec((tile, 1), lambda i: (i, 0)),
        compiler_params=pltpu.CompilerParams(
            dimension_semantics=("parallel",),
            vmem_limit_bytes=32 * 1024 * 1024,
        ),
    )(ha, state2d, w1, w2, wq1s, wq1e, wq2, wq3_row, bias_pack)
    return q


def make_params(key, n_actions, rnn_dim, state_shape, qjoint_dim):
    """Deterministic synthetic parameters, stored as (in, out) matrices."""
    ae_dim = n_actions + rnn_dim
    q_input = state_shape + ae_dim
    ks = jax.random.split(key, 5)

    def lin(k, fan_in, fan_out):
        bound = 1.0 / float(fan_in) ** 0.5
        kw, kb = jax.random.split(k)
        w = jax.random.uniform(kw, (fan_in, fan_out), jnp.float32, -bound, bound)
        b = jax.random.uniform(kb, (1, fan_out), jnp.float32, -bound, bound)
        return w, b

    w1, b1 = lin(ks[0], ae_dim, qjoint_dim)
    w2, b2 = lin(ks[1], qjoint_dim, ae_dim)
    wq1, bq1 = lin(ks[2], q_input, qjoint_dim)
    wq2, bq2 = lin(ks[3], qjoint_dim, qjoint_dim)
    wq3, bq3 = lin(ks[4], qjoint_dim, 1)

    return {
        "w1": w1, "b1": b1, "w2": w2, "b2": b2,
        # split Wq1 rows: first state_shape rows on state, rest on encoding sum
        "wq1s": wq1[:state_shape], "wq1e": wq1[state_shape:], "bq1": bq1,
        "wq2": wq2, "bq2": bq2, "wq3": wq3, "bq3": bq3,
        # unsplit version for the pure-JAX reference
        "_wq1": wq1,
    }


def qjoint_reference(state, hidden, actions, params):
    """Pure-f32 JAX mirror of the PyTorch forward (explicit concats)."""
    E, T, N, A = actions.shape
    R = hidden.shape[-1]
    ET = E * T
    ha = jnp.concatenate([hidden, actions], axis=-1).reshape(-1, R + A)
    h = jnp.maximum(ha @ params["w1"] + params["b1"], 0.0)
    enc = (h @ params["w2"] + params["b2"]).reshape(ET, N, -1).sum(axis=-2)
    inp = jnp.concatenate([state.reshape(ET, -1), enc], axis=-1)
    z = jnp.maximum(inp @ params["_wq1"] + params["bq1"], 0.0)
    z = jnp.maximum(z @ params["wq2"] + params["bq2"], 0.0)
    return z @ params["wq3"] + params["bq3"]


if __name__ == "__main__":
    # args: n_actions=4, rnn_dim=32, state_shape=16, qjoint_dim=32
    E, T, N = 2, 8, 4
    n_actions, rnn_dim, state_shape, qjoint_dim = 4, 32, 16, 32

    key = jax.random.PRNGKey(0)
    kp, ks, kh, ka = jax.random.split(key, 4)

    params = make_params(kp, n_actions, rnn_dim, state_shape, qjoint_dim)
    state = jax.random.normal(ks, (E, T, state_shape), jnp.float32)
    hidden = jax.random.normal(kh, (E, T, N, rnn_dim), jnp.float32)
    actions = jax.random.normal(ka, (E, T, N, n_actions), jnp.float32)

    q = qjoint_forward(state, hidden, actions, params)
    q = jax.block_until_ready(q)

    q_ref = qjoint_reference(state, hidden, actions, params)
    assert q.shape == (E * T, 1)
    # bf16 matmuls with f32 accumulation -> loosened tolerance vs f32 reference
    assert jnp.allclose(q, q_ref, atol=5e-2, rtol=5e-2), (
        float(jnp.max(jnp.abs(q - q_ref))))

    print("KERNEL_OK")
</pallas_src>

<mosaic_0001>
module attributes {stable_mosaic.version = 11 : i64} {
  func.func @qjoint_kernel(%arg0: i32, %arg1: memref<4x16x36xbf16, #tpu.memory_space<vmem>>, %arg2: memref<16x16xbf16, #tpu.memory_space<vmem>>, %arg3: memref<36x32xbf16, #tpu.memory_space<vmem>>, %arg4: memref<32x36xbf16, #tpu.memory_space<vmem>>, %arg5: memref<16x32xbf16, #tpu.memory_space<vmem>>, %arg6: memref<36x32xbf16, #tpu.memory_space<vmem>>, %arg7: memref<32x32xbf16, #tpu.memory_space<vmem>>, %arg8: memref<1x32xf32, #tpu.memory_space<vmem>>, %arg9: memref<8x128xf32, #tpu.memory_space<vmem>>, %arg10: memref<16x1xf32, #tpu.memory_space<vmem>>) attributes {dimension_semantics = [#tpu.dimension_semantics<parallel>], iteration_bounds = array<i64: 1>, scalar_prefetch = 0 : i64, scratch_operands = 0 : i64, tpu.core_type = #tpu.core_type<tc>, window_params = [{transform_indices = @transform_0, window_bounds = array<i64: 4, 16, 36>}, {transform_indices = @transform_1, window_bounds = array<i64: 16, 16>}, {pipeline_mode = #tpu.pipeline_mode<synchronous>, transform_indices = @transform_2, window_bounds = array<i64: 36, 32>}, {pipeline_mode = #tpu.pipeline_mode<synchronous>, transform_indices = @transform_3, window_bounds = array<i64: 32, 36>}, {pipeline_mode = #tpu.pipeline_mode<synchronous>, transform_indices = @transform_4, window_bounds = array<i64: 16, 32>}, {pipeline_mode = #tpu.pipeline_mode<synchronous>, transform_indices = @transform_5, window_bounds = array<i64: 36, 32>}, {pipeline_mode = #tpu.pipeline_mode<synchronous>, transform_indices = @transform_6, window_bounds = array<i64: 32, 32>}, {pipeline_mode = #tpu.pipeline_mode<synchronous>, transform_indices = @transform_7, window_bounds = array<i64: 1, 32>}, {pipeline_mode = #tpu.pipeline_mode<synchronous>, transform_indices = @transform_8, window_bounds = array<i64: 8, 128>}, {transform_indices = @transform_9, window_bounds = array<i64: 16, 1>}]} {
    %c0 = arith.constant 0 : index
    %c0_0 = arith.constant 0 : index
    %0 = vector.load %arg9[%c0, %c0_0] : memref<8x128xf32, #tpu.memory_space<vmem>>, vector<1x32xf32>
    %c1 = arith.constant 1 : index
    %c0_1 = arith.constant 0 : index
    %1 = vector.load %arg9[%c1, %c0_1] : memref<8x128xf32, #tpu.memory_space<vmem>>, vector<1x36xf32>
    %c2 = arith.constant 2 : index
    %c0_2 = arith.constant 0 : index
    %2 = vector.load %arg9[%c2, %c0_2] : memref<8x128xf32, #tpu.memory_space<vmem>>, vector<1x32xf32>
    %c3 = arith.constant 3 : index
    %c0_3 = arith.constant 0 : index
    %3 = vector.load %arg9[%c3, %c0_3] : memref<8x128xf32, #tpu.memory_space<vmem>>, vector<1x32xf32>
    %c4 = arith.constant 4 : index
    %c0_4 = arith.constant 0 : index
    %4 = vector.load %arg9[%c4, %c0_4] : memref<8x128xf32, #tpu.memory_space<vmem>>, vector<1x1xf32>
    %c0_5 = arith.constant 0 : index
    %c0_6 = arith.constant 0 : index
    %5 = vector.load %arg3[%c0_5, %c0_6] : memref<36x32xbf16, #tpu.memory_space<vmem>>, vector<36x32xbf16>
    %c0_7 = arith.constant 0 : index
    %c0_8 = arith.constant 0 : index
    %6 = vector.load %arg4[%c0_7, %c0_8] : memref<32x36xbf16, #tpu.memory_space<vmem>>, vector<32x36xbf16>
    %c0_9 = arith.constant 0 : index
    %c0_10 = arith.constant 0 : index
    %c0_11 = arith.constant 0 : index
    %7 = vector.load %arg1[%c0_9, %c0_10, %c0_11] : memref<4x16x36xbf16, #tpu.memory_space<vmem>>, vector<1x16x36xbf16>
    %8 = vector.shape_cast %7 : vector<1x16x36xbf16> to vector<16x36xbf16>
    %cst = arith.constant dense<0.000000e+00> : vector<16x32xf32>
    %9 = tpu.matmul %8, %5, %cst {dimension_numbers = #tpu.dot_dimension_numbers<[1], [0], [0], [1], [0, 0, 1, 1], [], []>} : vector<16x36xbf16>, vector<36x32xbf16>, vector<16x32xf32> -> vector<16x32xf32>
    %10 = vector.broadcast %0 : vector<1x32xf32> to vector<16x32xf32>
    %11 = arith.addf %9, %10 : vector<16x32xf32>
    %cst_12 = arith.constant 0.000000e+00 : f32
    %12 = vector.broadcast %cst_12 : f32 to vector<16x32xf32>
    %13 = arith.maximumf %11, %12 : vector<16x32xf32>
    %14 = arith.truncf %13 : vector<16x32xf32> to vector<16x32xbf16>
    %cst_13 = arith.constant dense<0.000000e+00> : vector<16x36xf32>
    %15 = tpu.matmul %14, %6, %cst_13 {dimension_numbers = #tpu.dot_dimension_numbers<[1], [0], [0], [1], [0, 0, 1, 1], [], []>} : vector<16x32xbf16>, vector<32x36xbf16>, vector<16x36xf32> -> vector<16x36xf32>
    %c1_14 = arith.constant 1 : index
    %c0_15 = arith.constant 0 : index
    %c0_16 = arith.constant 0 : index
    %16 = vector.load %arg1[%c1_14, %c0_15, %c0_16] : memref<4x16x36xbf16, #tpu.memory_space<vmem>>, vector<1x16x36xbf16>
    %17 = vector.shape_cast %16 : vector<1x16x36xbf16> to vector<16x36xbf16>
    %cst_17 = arith.constant dense<0.000000e+00> : vector<16x32xf32>
    %18 = tpu.matmul %17, %5, %cst_17 {dimension_numbers = #tpu.dot_dimension_numbers<[1], [0], [0], [1], [0, 0, 1, 1], [], []>} : vector<16x36xbf16>, vector<36x32xbf16>, vector<16x32xf32> -> vector<16x32xf32>
    %19 = vector.broadcast %0 : vector<1x32xf32> to vector<16x32xf32>
    %20 = arith.addf %18, %19 : vector<16x32xf32>
    %cst_18 = arith.constant 0.000000e+00 : f32
    %21 = vector.broadcast %cst_18 : f32 to vector<16x32xf32>
    %22 = arith.maximumf %20, %21 : vector<16x32xf32>
    %23 = arith.truncf %22 : vector<16x32xf32> to vector<16x32xbf16>
    %cst_19 = arith.constant dense<0.000000e+00> : vector<16x36xf32>
    %24 = tpu.matmul %23, %6, %cst_19 {dimension_numbers = #tpu.dot_dimension_numbers<[1], [0], [0], [1], [0, 0, 1, 1], [], []>} : vector<16x32xbf16>, vector<32x36xbf16>, vector<16x36xf32> -> vector<16x36xf32>
    %25 = arith.addf %15, %24 : vector<16x36xf32>
    %c2_20 = arith.constant 2 : index
    %c0_21 = arith.constant 0 : index
    %c0_22 = arith.constant 0 : index
    %26 = vector.load %arg1[%c2_20, %c0_21, %c0_22] : memref<4x16x36xbf16, #tpu.memory_space<vmem>>, vector<1x16x36xbf16>
    %27 = vector.shape_cast %26 : vector<1x16x36xbf16> to vector<16x36xbf16>
    %cst_23 = arith.constant dense<0.000000e+00> : vector<16x32xf32>
    %28 = tpu.matmul %27, %5, %cst_23 {dimension_numbers = #tpu.dot_dimension_numbers<[1], [0], [0], [1], [0, 0, 1, 1], [], []>} : vector<16x36xbf16>, vector<36x32xbf16>, vector<16x32xf32> -> vector<16x32xf32>
    %29 = vector.broadcast %0 : vector<1x32xf32> to vector<16x32xf32>
    %30 = arith.addf %28, %29 : vector<16x32xf32>
    %cst_24 = arith.constant 0.000000e+00 : f32
    %31 = vector.broadcast %cst_24 : f32 to vector<16x32xf32>
    %32 = arith.maximumf %30, %31 : vector<16x32xf32>
    %33 = arith.truncf %32 : vector<16x32xf32> to vector<16x32xbf16>
    %cst_25 = arith.constant dense<0.000000e+00> : vector<16x36xf32>
    %34 = tpu.matmul %33, %6, %cst_25 {dimension_numbers = #tpu.dot_dimension_numbers<[1], [0], [0], [1], [0, 0, 1, 1], [], []>} : vector<16x32xbf16>, vector<32x36xbf16>, vector<16x36xf32> -> vector<16x36xf32>
    %35 = arith.addf %25, %34 : vector<16x36xf32>
    %c3_26 = arith.constant 3 : index
    %c0_27 = arith.constant 0 : index
    %c0_28 = arith.constant 0 : index
    %36 = vector.load %arg1[%c3_26, %c0_27, %c0_28] : memref<4x16x36xbf16, #tpu.memory_space<vmem>>, vector<1x16x36xbf16>
    %37 = vector.shape_cast %36 : vector<1x16x36xbf16> to vector<16x36xbf16>
    %cst_29 = arith.constant dense<0.000000e+00> : vector<16x32xf32>
    %38 = tpu.matmul %37, %5, %cst_29 {dimension_numbers = #tpu.dot_dimension_numbers<[1], [0], [0], [1], [0, 0, 1, 1], [], []>} : vector<16x36xbf16>, vector<36x32xbf16>, vector<16x32xf32> -> vector<16x32xf32>
    %39 = vector.broadcast %0 : vector<1x32xf32> to vector<16x32xf32>
    %40 = arith.addf %38, %39 : vector<16x32xf32>
    %cst_30 = arith.constant 0.000000e+00 : f32
    %41 = vector.broadcast %cst_30 : f32 to vector<16x32xf32>
    %42 = arith.maximumf %40, %41 : vector<16x32xf32>
    %43 = arith.truncf %42 : vector<16x32xf32> to vector<16x32xbf16>
    %cst_31 = arith.constant dense<0.000000e+00> : vector<16x36xf32>
    %44 = tpu.matmul %43, %6, %cst_31 {dimension_numbers = #tpu.dot_dimension_numbers<[1], [0], [0], [1], [0, 0, 1, 1], [], []>} : vector<16x32xbf16>, vector<32x36xbf16>, vector<16x36xf32> -> vector<16x36xf32>
    %45 = arith.addf %35, %44 : vector<16x36xf32>
    %cst_32 = arith.constant 4.000000e+00 : f32
    %46 = vector.broadcast %cst_32 : f32 to vector<1x36xf32>
    %47 = arith.mulf %46, %1 : vector<1x36xf32>
    %48 = vector.broadcast %47 : vector<1x36xf32> to vector<16x36xf32>
    %49 = arith.addf %45, %48 : vector<16x36xf32>
    %c0_33 = arith.constant 0 : index
    %c0_34 = arith.constant 0 : index
    %50 = vector.load %arg2[%c0_33, %c0_34] : memref<16x16xbf16, #tpu.memory_space<vmem>>, vector<16x16xbf16>
    %c0_35 = arith.constant 0 : index
    %c0_36 = arith.constant 0 : index
    %51 = vector.load %arg5[%c0_35, %c0_36] : memref<16x32xbf16, #tpu.memory_space<vmem>>, vector<16x32xbf16>
    %cst_37 = arith.constant dense<0.000000e+00> : vector<16x32xf32>
    %52 = tpu.matmul %50, %51, %cst_37 {dimension_numbers = #tpu.dot_dimension_numbers<[1], [0], [0], [1], [0, 0, 1, 1], [], []>} : vector<16x16xbf16>, vector<16x32xbf16>, vector<16x32xf32> -> vector<16x32xf32>
    %53 = arith.truncf %49 : vector<16x36xf32> to vector<16x36xbf16>
    %c0_38 = arith.constant 0 : index
    %c0_39 = arith.constant 0 : index
    %54 = vector.load %arg6[%c0_38, %c0_39] : memref<36x32xbf16, #tpu.memory_space<vmem>>, vector<36x32xbf16>
    %cst_40 = arith.constant dense<0.000000e+00> : vector<16x32xf32>
    %55 = tpu.matmul %53, %54, %cst_40 {dimension_numbers = #tpu.dot_dimension_numbers<[1], [0], [0], [1], [0, 0, 1, 1], [], []>} : vector<16x36xbf16>, vector<36x32xbf16>, vector<16x32xf32> -> vector<16x32xf32>
    %56 = arith.addf %52, %55 : vector<16x32xf32>
    %57 = vector.broadcast %2 : vector<1x32xf32> to vector<16x32xf32>
    %58 = arith.addf %56, %57 : vector<16x32xf32>
    %cst_41 = arith.constant 0.000000e+00 : f32
    %59 = vector.broadcast %cst_41 : f32 to vector<16x32xf32>
    %60 = arith.maximumf %58, %59 : vector<16x32xf32>
    %61 = arith.truncf %60 : vector<16x32xf32> to vector<16x32xbf16>
    %c0_42 = arith.constant 0 : index
    %c0_43 = arith.constant 0 : index
    %62 = vector.load %arg7[%c0_42, %c0_43] : memref<32x32xbf16, #tpu.memory_space<vmem>>, vector<32x32xbf16>
    %cst_44 = arith.constant dense<0.000000e+00> : vector<16x32xf32>
    %63 = tpu.matmul %61, %62, %cst_44 {dimension_numbers = #tpu.dot_dimension_numbers<[1], [0], [0], [1], [0, 0, 1, 1], [], []>} : vector<16x32xbf16>, vector<32x32xbf16>, vector<16x32xf32> -> vector<16x32xf32>
    %64 = vector.broadcast %3 : vector<1x32xf32> to vector<16x32xf32>
    %65 = arith.addf %63, %64 : vector<16x32xf32>
    %cst_45 = arith.constant 0.000000e+00 : f32
    %66 = vector.broadcast %cst_45 : f32 to vector<16x32xf32>
    %67 = arith.maximumf %65, %66 : vector<16x32xf32>
    %c0_46 = arith.constant 0 : index
    %c0_47 = arith.constant 0 : index
    %68 = vector.load %arg8[%c0_46, %c0_47] : memref<1x32xf32, #tpu.memory_space<vmem>>, vector<1x32xf32>
    %69 = vector.broadcast %68 : vector<1x32xf32> to vector<16x32xf32>
    %70 = arith.mulf %67, %69 : vector<16x32xf32>
    %cst_48 = arith.constant dense<0.000000e+00> : vector<16xf32>
    %71 = vector.multi_reduction <add>, %70, %cst_48 [1] : vector<16x32xf32> to vector<16xf32>
    %72 = vector.shape_cast %71 : vector<16xf32> to vector<16x1xf32>
    %73 = vector.broadcast %4 : vector<1x1xf32> to vector<16x1xf32>
    %74 = arith.addf %72, %73 : vector<16x1xf32>
    %c0_49 = arith.constant 0 : index
    %c0_50 = arith.constant 0 : index
    %75 = vector.load %arg10[%c0_49, %c0_50] : memref<16x1xf32, #tpu.memory_space<vmem>>, vector<16x1xf32>
    tpu.vector_store %arg10[%c0_49, %c0_50], %74 {strides = array<i32>} : memref<16x1xf32, #tpu.memory_space<vmem>>, vector<16x1xf32>,
    return
  }
  func.func @transform_0(%arg0: i32) -> (i32, i32, i32) {
    %c0_i32 = arith.constant 0 : i32
    %c0_i32_0 = arith.constant 0 : i32
    %c0_i32_1 = arith.constant 0 : i32
    return %c0_i32, %arg0, %c0_i32_0 : i32, i32, i32
  }
  func.func @transform_1(%arg0: i32) -> (i32, i32) {
    %c0_i32 = arith.constant 0 : i32
    %c0_i32_0 = arith.constant 0 : i32
    return %arg0, %c0_i32 : i32, i32
  }
  func.func @transform_2(%arg0: i32) -> (i32, i32) {
    %c0_i32 = arith.constant 0 : i32
    %c0_i32_0 = arith.constant 0 : i32
    %c0_i32_1 = arith.constant 0 : i32
    return %c0_i32, %c0_i32_0 : i32, i32
  }
  func.func @transform_3(%arg0: i32) -> (i32, i32) {
    %c0_i32 = arith.constant 0 : i32
    %c0_i32_0 = arith.constant 0 : i32
    %c0_i32_1 = arith.constant 0 : i32
    return %c0_i32, %c0_i32_0 : i32, i32
  }
  func.func @transform_4(%arg0: i32) -> (i32, i32) {
    %c0_i32 = arith.constant 0 : i32
    %c0_i32_0 = arith.constant 0 : i32
    %c0_i32_1 = arith.constant 0 : i32
    return %c0_i32, %c0_i32_0 : i32, i32
  }
  func.func @transform_5(%arg0: i32) -> (i32, i32) {
    %c0_i32 = arith.constant 0 : i32
    %c0_i32_0 = arith.constant 0 : i32
    %c0_i32_1 = arith.constant 0 : i32
    return %c0_i32, %c0_i32_0 : i32, i32
  }
  func.func @transform_6(%arg0: i32) -> (i32, i32) {
    %c0_i32 = arith.constant 0 : i32
    %c0_i32_0 = arith.constant 0 : i32
    %c0_i32_1 = arith.constant 0 : i32
    return %c0_i32, %c0_i32_0 : i32, i32
  }
  func.func @transform_7(%arg0: i32) -> (i32, i32) {
    %c0_i32 = arith.constant 0 : i32
    %c0_i32_0 = arith.constant 0 : i32
    %c0_i32_1 = arith.constant 0 : i32
    return %c0_i32, %c0_i32_0 : i32, i32
  }
  func.func @transform_8(%arg0: i32) -> (i32, i32) {
    %c0_i32 = arith.constant 0 : i32
    %c0_i32_0 = arith.constant 0 : i32
    %c0_i32_1 = arith.constant 0 : i32
    return %c0_i32, %c0_i32_0 : i32, i32
  }
  func.func @transform_9(%arg0: i32) -> (i32, i32) {
    %c0_i32 = arith.constant 0 : i32
    %c0_i32_0 = arith.constant 0 : i32
    return %arg0, %c0_i32 : i32, i32
  }
}

</mosaic_0001>

<llo_original>
// kernel: tpu_custom_call.1
$region0: #{tpu_custom_call.1}
  #allocation0 [shape = 'u32[]', space=smem, size = 0x4, offset = 0x4, fixed_abs, tag = 'smem constant byte address 0x4 - core index']
  #allocation1 [shape = 'u32[144,128]{1,0:T(1,128)}', space=vmem, size = 0x12000, scoped, tag = 'internal scratch']
  %s0 = inlined_call_operand.vmem [shape: bf16[4,16,36], index: 0, kind: input, shape index: {}]
  %s1 = inlined_call_operand.hbm [shape: bf16[16,16], index: 1, kind: input, shape index: {}]
  %s2 = inlined_call_operand.vmem [shape: bf16[36,32], index: 2, kind: input, shape index: {}]
  %s3 = inlined_call_operand.vmem [shape: bf16[32,36], index: 3, kind: input, shape index: {}]
  %s4 = inlined_call_operand.hbm [shape: bf16[16,32], index: 4, kind: input, shape index: {}]
  %s5 = inlined_call_operand.vmem [shape: bf16[36,32], index: 5, kind: input, shape index: {}]
  %s6 = inlined_call_operand.vmem [shape: bf16[32,32], index: 6, kind: input, shape index: {}]
  %s7 = inlined_call_operand.vmem [shape: f32[1,32], index: 7, kind: input, shape index: {}]
  %s8 = inlined_call_operand.hbm [shape: f32[8,128], index: 8, kind: input, shape index: {}]
  %s9 = inlined_call_operand.vmem [shape: f32[16,1], index: 9, kind: output, shape index: {}]
  %s10 = sld [smem:[#allocation0]]
  $region58: #{tpu_custom_call.1} parent=0
    _
  %s12 = ssub.s32 1, %s10
  %s13 = scalar_select 0, %s12, %s10
  $region1: #{tpu_custom_call.1} parent=0
    #allocation2 [shape = 'u8[4096]{0}', space=vmem, size = 0x1000, scoped, tag = 'input window, operand 1, single buffered']
    #allocation3 [shape = 's32[1]{0}', space=sflag, size = 0x4, scoped, tag = 'scoped memory for tpu_custom_call.1']
    #allocation4 [shape = 'u8[4096]{0}', space=vmem, size = 0x1000, scoped, tag = 'input window, operand 4, single buffered']
    #allocation5 [shape = 's32[1]{0}', space=sflag, size = 0x4, scoped, tag = 'scoped memory for tpu_custom_call.1']
    #allocation6 [shape = 'u8[4096]{0}', space=vmem, size = 0x1000, scoped, tag = 'input window, operand 8, single buffered']
    %14 = vsyncpa [#allocation3], 0
    %15 = vsyncpa [#allocation5], 0
    // Predicated region
    $region2: #{tpu_custom_call.1} parent=1 // pred_check
      _
    $region3: #{tpu_custom_call.1} parent=1 // pred_check_branch
      %17 = sbr.rel (0) target = $region5
    $region4: #{tpu_custom_call.1} parent=1 // pred_region
      _
    $region5: #{tpu_custom_call.1} parent=1 // pred_fallthru
      _
    // Predicated region
    $region6: #{tpu_custom_call.1} parent=1 // pred_check
      _
    $region7: #{tpu_custom_call.1} parent=1 // pred_check_branch
      %19 = sbr.rel (0) target = $region9
    $region8: #{tpu_custom_call.1} parent=1 // pred_region
      %s21 = ssub.s32 128, 128
      %22 = vsyncadd [#allocation3], %s21
      %s23 = sshll.u32 [#allocation2], 4
      %s24 = int_to_ptr.vmem [resolvable:$true] %s23
      %29 = dma.hbm_to_vmem [thread:$0]  %s1, 128, %s24, [#allocation3], 64, 64, 4
    $region9: #{tpu_custom_call.1} parent=1 // pred_fallthru
      _
    // Predicated region
    $region10: #{tpu_custom_call.1} parent=1 // pred_check
      _
    $region11: #{tpu_custom_call.1} parent=1 // pred_check_branch
      %31 = sbr.rel (0) target = $region13
    $region12: #{tpu_custom_call.1} parent=1 // pred_region
      _
    $region13: #{tpu_custom_call.1} parent=1 // pred_fallthru
      _
    // Predicated region
    $region14: #{tpu_custom_call.1} parent=1 // pred_check
      _
    $region15: #{tpu_custom_call.1} parent=1 // pred_check_branch
      %33 = sbr.rel (0) target = $region17
    $region16: #{tpu_custom_call.1} parent=1 // pred_region
      _
    $region17: #{tpu_custom_call.1} parent=1 // pred_fallthru
      _
    // Predicated region
    $region18: #{tpu_custom_call.1} parent=1 // pred_check
      _
    $region19: #{tpu_custom_call.1} parent=1 // pred_check_branch
      %35 = sbr.rel (0) target = $region21
    $region20: #{tpu_custom_call.1} parent=1 // pred_region
      %s37 = ssub.s32 128, 128
      %38 = vsyncadd [#allocation5], %s37
      %s39 = sshll.u32 [#allocation4], 4
      %s40 = int_to_ptr.vmem [resolvable:$true] %s39
      %45 = dma.hbm_to_vmem [thread:$0]  %s4, 128, %s40, [#allocation5], 64, 64, 4
    $region21: #{tpu_custom_call.1} parent=1 // pred_fallthru
      _
    // Predicated region
    $region22: #{tpu_custom_call.1} parent=1 // pred_check
      _
    $region23: #{tpu_custom_call.1} parent=1 // pred_check_branch
      %47 = sbr.rel (0) target = $region25
    $region24: #{tpu_custom_call.1} parent=1 // pred_region
      _
    $region25: #{tpu_custom_call.1} parent=1 // pred_fallthru
      _
    // Predicated region
    $region26: #{tpu_custom_call.1} parent=1 // pred_check
      _
    $region27: #{tpu_custom_call.1} parent=1 // pred_check_branch
      %49 = sbr.rel (0) target = $region29
    $region28: #{tpu_custom_call.1} parent=1 // pred_region
      _
    $region29: #{tpu_custom_call.1} parent=1 // pred_fallthru
      _
    // Predicated region
    $region30: #{tpu_custom_call.1} parent=1 // pred_check
      _
    $region31: #{tpu_custom_call.1} parent=1 // pred_check_branch
      %51 = sbr.rel (0) target = $region33
    $region32: #{tpu_custom_call.1} parent=1 // pred_region
      _
    $region33: #{tpu_custom_call.1} parent=1 // pred_fallthru
      _
    // Predicated region
    $region34: #{tpu_custom_call.1} parent=1 // pred_check
      _
    $region35: #{tpu_custom_call.1} parent=1 // pred_check_branch
      %53 = sbr.rel (0) target = $region37
    $region36: #{tpu_custom_call.1} parent=1 // pred_region
      %s55 = ssub.s32 128, 128
      %56 = vsyncadd [#allocation5], %s55
      %s58 = sshll.u32 [#allocation6], 4
      %s59 = int_to_ptr.vmem [resolvable:$true] %s58
      %61 = dma.hbm_to_vmem [thread:$0]  %s8, 128, %s59, [#allocation5]
    $region37: #{tpu_custom_call.1} parent=1 // pred_fallthru
      _
    // Predicated region
    $region38: #{tpu_custom_call.1} parent=1 // pred_check
      _
    $region39: #{tpu_custom_call.1} parent=1 // pred_check_branch
      %63 = sbr.rel (0) target = $region41
    $region40: #{tpu_custom_call.1} parent=1 // pred_region
      %64 = dma.done [#allocation3], 128
    $region41: #{tpu_custom_call.1} parent=1 // pred_fallthru
      _
    // Predicated region
    $region42: #{tpu_custom_call.1} parent=1 // pred_check
      _
    $region43: #{tpu_custom_call.1} parent=1 // pred_check_branch
      %66 = sbr.rel (0) target = $region45
    $region44: #{tpu_custom_call.1} parent=1 // pred_region
      %67 = dma.done [#allocation5], 128
    $region45: #{tpu_custom_call.1} parent=1 // pred_fallthru
      _
    // Predicated region
    $region46: #{tpu_custom_call.1} parent=1 // pred_check
      _
    $region47: #{tpu_custom_call.1} parent=1 // pred_check_branch
      %69 = sbr.rel (0) target = $region49
    $region48: #{tpu_custom_call.1} parent=1 // pred_region
      %70 = dma.done [#allocation5], 128
    $region49: #{tpu_custom_call.1} parent=1 // pred_fallthru
      _
    %v72 = vld [vmem:[#allocation6] sm:$0x1]
    %v73 = vld [vmem:[#allocation6 + $0x1] sm:$0x1]
    %v74 = vld [vmem:[#allocation6 + $0x2] sm:$0x1]
    %v75 = vld [vmem:[#allocation6 + $0x3] sm:$0x1]
    %v76 = vld [vmem:[#allocation6 + $0x4] sm:$0x1]
    %v77 = vld [vmem:[%s2] sm:$0xf]
    %v78 = vld [vmem:[%s2 + $0x4] sm:$0xf]
    %v79 = vld [vmem:[%s2 + $0x8] sm:$0xf]
    %v80 = vld [vmem:[%s2 + $0xc] sm:$0xf]
    %v81 = vld [vmem:[%s2 + $0x10] sm:$0x3]
    %v82 = vld [vmem:[%s3] sm:$0xf]
    %v83 = vld [vmem:[%s3 + $0x4] sm:$0xf]
    %v84 = vld [vmem:[%s3 + $0x8] sm:$0xf]
    %v85 = vld [vmem:[%s3 + $0xc] sm:$0xf]
    %v86 = vld [vmem:[%s0] sm:$0xf]
    %v87 = vld [vmem:[%s0 + $0x4] sm:$0xf]
    %v88 = vlaneseq
    %v89 = vshrl.u32 %v88, 7
    %v90 = vsub.s32 0, %v89
    %v91 = vrot.slane %v72, %v90
    %v94 = vunpack.c.l.b16 %v86
    %v95 = vunpack.c.l.b16 %v87
    %v96 = vpack.c.b16 %v95, %v94
    %v102 = vunpack.c.l.b16 %v77
    %v103 = vunpack.c.l.b16 %v78
    %v104 = vunpack.c.l.b16 %v79
    %v105 = vunpack.c.l.b16 %v80
    %v106 = vunpack.c.l.b16 %v81
    %v107 = vpack.c.b16 %v103, %v102
    %v108 = vpack.c.b16 %v105, %v104
    %v109 = vpack.c.b16 %v106, %v106
    %vm112 = vcmask 293888
    %v114 = vsel %vm112, %v96, 0
    %vm116 = vcmask 1041408
    %v118 = vsel %vm116, %v109, 0
    %120 = vmatprep.subr.bf16.mxu0 0
    %121 = vmatpush1.bf16.msra.mxu0 0
    %122 = vmatprep.subr.bf16.mxu0 0
    %123 = vmatpush1.bf16.msra.mxu0 0
    %124 = vmatprep.subr.bf16.mxu0 0
    %125 = vmatpush1.bf16.msra.mxu0 0
    %126 = vmatprep.subr.bf16.mxu0 0
    %127 = vmatpush1.bf16.msra.mxu0 0
    %128 = vmatprep.subr.bf16.mxu0 0
    %129 = vmatpush1.bf16.msra.mxu0 0
    %130 = vmatprep.subr.bf16.mxu0 0
    %131 = vmatpush1.bf16.msra.mxu0 %v118
    %132 = vmatprep.subr.bf16.mxu0 0
    %133 = vmatpush1.bf16.msra.mxu0 %v108
    %134 = vmatprep.subr.bf16.mxu0 0
    %135 = vmatpush1.bf16.msra.mxu0 %v107
    %136 = vmatprep.subr.bf16.mxu0 0
    %137 = vmatpush2.bf16.msra.mxu0 0
    %138 = vmatprep.subr.bf16.mxu0 0
    %139 = vmatpush2.bf16.msra.mxu0 0
    %140 = vmatprep.subr.bf16.mxu0 0
    %141 = vmatpush2.bf16.msra.mxu0 0
    %142 = vmatprep.subr.bf16.mxu0 0
    %143 = vmatpush2.bf16.msra.mxu0 0
    %144 = vmatprep.subr.bf16.mxu0 0
    %145 = vmatpush2.bf16.msra.mxu0 0
    %146 = vmatprep.subr.bf16.mxu0 0
    %147 = vmatpush2.bf16.msra.mxu0 0
    %148 = vmatprep.subr.bf16.mxu0 0
    %149 = vmatpush2.bf16.msra.mxu0 0
    %150 = vmatprep.subr.bf16.mxu0 0
    %151 = vmatpush2.bf16.msra.mxu0 0
    %152 = vmatprep.mubr.bf16.mxu0 0
    %153 = vmatmul.mubr.bf16.gmra.mxu0 %v114
    %v154 = vpop.f32.mrf.mxu0
    %v155 = vadd.f32 %v91, %v154
    %v156 = vpop.f32.mrf.mxu0
    %v157 = vpop.f32.mrf.mxu0
    %v158 = vadd.f32 %v91, %v157
    %v159 = vpop.f32.mrf.mxu0
    %160 = vdwg.mxu0
    %v161 = vmax.f32 %v155, 0.0
    %v162 = vmax.f32 %v158, 0.0
    %v163 = vpack.c.bf16 %v162, %v161
    %s164 = scalar_lea.vmem %s0, 8
    %v165 = vld [vmem:[%s164] sm:$0xf]
    %v166 = vld [vmem:[%s164 + $0x4] sm:$0xf]
    %v169 = vunpack.c.l.b16 %v165
    %v170 = vunpack.c.l.b16 %v166
    %v171 = vpack.c.b16 %v170, %v169
    %v173 = vsel %vm112, %v171, 0
    %175 = vmatprep.subr.bf16.mxu0 0
    %176 = vmatpush1.bf16.msra.mxu0 0
    %177 = vmatprep.subr.bf16.mxu0 0
    %178 = vmatpush1.bf16.msra.mxu0 0
    %179 = vmatprep.subr.bf16.mxu0 0
    %180 = vmatpush1.bf16.msra.mxu0 0
    %181 = vmatprep.subr.bf16.mxu0 0
    %182 = vmatpush1.bf16.msra.mxu0 0
    %183 = vmatprep.subr.bf16.mxu0 0
    %184 = vmatpush1.bf16.msra.mxu0 0
    %185 = vmatprep.subr.bf16.mxu0 0
    %186 = vmatpush1.bf16.msra.mxu0 %v118
    %187 = vmatprep.subr.bf16.mxu0 0
    %188 = vmatpush1.bf16.msra.mxu0 %v108
    %189 = vmatprep.subr.bf16.mxu0 0
    %190 = vmatpush1.bf16.msra.mxu0 %v107
    %191 = vmatprep.subr.bf16.mxu0 0
    %192 = vmatpush2.bf16.msra.mxu0 0
    %193 = vmatprep.subr.bf16.mxu0 0
    %194 = vmatpush2.bf16.msra.mxu0 0
    %195 = vmatprep.subr.bf16.mxu0 0
    %196 = vmatpush2.bf16.msra.mxu0 0
    %197 = vmatprep.subr.bf16.mxu0 0
    %198 = vmatpush2.bf16.msra.mxu0 0
    %199 = vmatprep.subr.bf16.mxu0 0
    %200 = vmatpush2.bf16.msra.mxu0 0
    %201 = vmatprep.subr.bf16.mxu0 0
    %202 = vmatpush2.bf16.msra.mxu0 0
    %203 = vmatprep.subr.bf16.mxu0 0
    %204 = vmatpush2.bf16.msra.mxu0 0
    %205 = vmatprep.subr.bf16.mxu0 0
    %206 = vmatpush2.bf16.msra.mxu0 0
    %207 = vmatprep.mubr.bf16.mxu0 0
    %208 = vmatmul.mubr.bf16.gmra.mxu0 %v173
    %v209 = vpop.f32.mrf.mxu0
    %v210 = vadd.f32 %v91, %v209
    %v211 = vpop.f32.mrf.mxu0
    %v212 = vpop.f32.mrf.mxu0
    %v213 = vadd.f32 %v91, %v212
    %v214 = vpop.f32.mrf.mxu0
    %215 = vdwg.mxu0
    %v216 = vmax.f32 %v210, 0.0
    %v217 = vmax.f32 %v213, 0.0
    %v218 = vpack.c.bf16 %v217, %v216
    %v223 = vunpack.c.l.b16 %v82
    %v224 = vunpack.c.l.b16 %v83
    %v225 = vunpack.c.l.b16 %v84
    %v226 = vunpack.c.l.b16 %v85
    %v227 = vpack.c.b16 %v224, %v223
    %v228 = vpack.c.b16 %v226, %v225
    %vm231 = vcmask 261120
    %v233 = vsel %vm231, %v218, 0
    %235 = vmatprep.subr.bf16.mxu0 0
    %236 = vmatpush1.bf16.msra.mxu0 0
    %237 = vmatprep.subr.bf16.mxu0 0
    %238 = vmatpush1.bf16.msra.mxu0 0
    %239 = vmatprep.subr.bf16.mxu0 0
    %240 = vmatpush1.bf16.msra.mxu0 0
    %241 = vmatprep.subr.bf16.mxu0 0
    %242 = vmatpush1.bf16.msra.mxu0 0
    %243 = vmatprep.subr.bf16.mxu0 0
    %244 = vmatpush1.bf16.msra.mxu0 0
    %245 = vmatprep.subr.bf16.mxu0 0
    %246 = vmatpush1.bf16.msra.mxu0 0
    %247 = vmatprep.subr.bf16.mxu0 0
    %248 = vmatpush1.bf16.msra.mxu0 %v228
    %249 = vmatprep.subr.bf16.mxu0 0
    %250 = vmatpush1.bf16.msra.mxu0 %v227
    %251 = vmatprep.subr.bf16.mxu0 0
    %252 = vmatpush2.bf16.msra.mxu0 0
    %253 = vmatprep.subr.bf16.mxu0 0
    %254 = vmatpush2.bf16.msra.mxu0 0
    %255 = vmatprep.subr.bf16.mxu0 0
    %256 = vmatpush2.bf16.msra.mxu0 0
    %257 = vmatprep.subr.bf16.mxu0 0
    %258 = vmatpush2.bf16.msra.mxu0 0
    %259 = vmatprep.subr.bf16.mxu0 0
    %260 = vmatpush2.bf16.msra.mxu0 0
    %261 = vmatprep.subr.bf16.mxu0 0
    %262 = vmatpush2.bf16.msra.mxu0 0
    %263 = vmatprep.subr.bf16.mxu0 0
    %264 = vmatpush2.bf16.msra.mxu0 0
    %265 = vmatprep.subr.bf16.mxu0 0
    %266 = vmatpush2.bf16.msra.mxu0 0
    %267 = vmatprep.mubr.bf16.mxu0 0
    %268 = vmatmul.mubr.bf16.gmra.mxu0 %v233
    %v269 = vpop.f32.mrf.mxu0
    %v270 = vadd.f32 0.0, %v269
    %v271 = vpop.f32.mrf.mxu0
    %v272 = vpop.f32.mrf.mxu0
    %v273 = vadd.f32 0.0, %v272
    %v274 = vpop.f32.mrf.mxu0
    %275 = vdwg.mxu0
    %v277 = vsel %vm231, %v163, 0
    %279 = vmatprep.subr.bf16.mxu0 0
    %280 = vmatpush1.bf16.msra.mxu0 0
    %281 = vmatprep.subr.bf16.mxu0 0
    %282 = vmatpush1.bf16.msra.mxu0 0
    %283 = vmatprep.subr.bf16.mxu0 0
    %284 = vmatpush1.bf16.msra.mxu0 0
    %285 = vmatprep.subr.bf16.mxu0 0
    %286 = vmatpush1.bf16.msra.mxu0 0
    %287 = vmatprep.subr.bf16.mxu0 0
    %288 = vmatpush1.bf16.msra.mxu0 0
    %289 = vmatprep.subr.bf16.mxu0 0
    %290 = vmatpush1.bf16.msra.mxu0 0
    %291 = vmatprep.subr.bf16.mxu0 0
    %292 = vmatpush1.bf16.msra.mxu0 %v228
    %293 = vmatprep.subr.bf16.mxu0 0
    %294 = vmatpush1.bf16.msra.mxu0 %v227
    %295 = vmatprep.subr.bf16.mxu0 0
    %296 = vmatpush2.bf16.msra.mxu0 0
    %297 = vmatprep.subr.bf16.mxu0 0
    %298 = vmatpush2.bf16.msra.mxu0 0
    %299 = vmatprep.subr.bf16.mxu0 0
    %300 = vmatpush2.bf16.msra.mxu0 0
    %301 = vmatprep.subr.bf16.mxu0 0
    %302 = vmatpush2.bf16.msra.mxu0 0
    %303 = vmatprep.subr.bf16.mxu0 0
    %304 = vmatpush2.bf16.msra.mxu0 0
    %305 = vmatprep.subr.bf16.mxu0 0
    %306 = vmatpush2.bf16.msra.mxu0 0
    %307 = vmatprep.subr.bf16.mxu0 0
    %308 = vmatpush2.bf16.msra.mxu0 0
    %309 = vmatprep.subr.bf16.mxu0 0
    %310 = vmatpush2.bf16.msra.mxu0 0
    %311 = vmatprep.mubr.bf16.mxu0 0
    %312 = vmatmul.mubr.bf16.gmra.mxu0 %v277
    %v313 = vpop.f32.mrf.mxu0
    %v314 = vadd.f32 %v270, %v313
    %v315 = vpop.f32.mrf.mxu0
    %v316 = vpop.f32.mrf.mxu0
    %v317 = vadd.f32 %v273, %v316
    %v318 = vpop.f32.mrf.mxu0
    %319 = vdwg.mxu0
    %s320 = scalar_lea.vmem %s0, 16
    %v321 = vld [vmem:[%s320] sm:$0xf]
    %v322 = vld [vmem:[%s320 + $0x4] sm:$0xf]
    %v325 = vunpack.c.l.b16 %v321
    %v326 = vunpack.c.l.b16 %v322
    %v327 = vpack.c.b16 %v326, %v325
    %v329 = vsel %vm112, %v327, 0
    %331 = vmatprep.subr.bf16.mxu0 0
    %332 = vmatpush1.bf16.msra.mxu0 0
    %333 = vmatprep.subr.bf16.mxu0 0
    %334 = vmatpush1.bf16.msra.mxu0 0
    %335 = vmatprep.subr.bf16.mxu0 0
    %336 = vmatpush1.bf16.msra.mxu0 0
    %337 = vmatprep.subr.bf16.mxu0 0
    %338 = vmatpush1.bf16.msra.mxu0 0
    %339 = vmatprep.subr.bf16.mxu0 0
    %340 = vmatpush1.bf16.msra.mxu0 0
    %341 = vmatprep.subr.bf16.mxu0 0
    %342 = vmatpush1.bf16.msra.mxu0 %v118
    %343 = vmatprep.subr.bf16.mxu0 0
    %344 = vmatpush1.bf16.msra.mxu0 %v108
    %345 = vmatprep.subr.bf16.mxu0 0
    %346 = vmatpush1.bf16.msra.mxu0 %v107
    %347 = vmatprep.subr.bf16.mxu0 0
    %348 = vmatpush2.bf16.msra.mxu0 0
    %349 = vmatprep.subr.bf16.mxu0 0
    %350 = vmatpush2.bf16.msra.mxu0 0
    %351 = vmatprep.subr.bf16.mxu0 0
    %352 = vmatpush2.bf16.msra.mxu0 0
    %353 = vmatprep.subr.bf16.mxu0 0
    %354 = vmatpush2.bf16.msra.mxu0 0
    %355 = vmatprep.subr.bf16.mxu0 0
    %356 = vmatpush2.bf16.msra.mxu0 0
    %357 = vmatprep.subr.bf16.mxu0 0
    %358 = vmatpush2.bf16.msra.mxu0 0
    %359 = vmatprep.subr.bf16.mxu0 0
    %360 = vmatpush2.bf16.msra.mxu0 0
    %361 = vmatprep.subr.bf16.mxu0 0
    %362 = vmatpush2.bf16.msra.mxu0 0
    %363 = vmatprep.mubr.bf16.mxu0 0
    %364 = vmatmul.mubr.bf16.gmra.mxu0 %v329
    %v365 = vpop.f32.mrf.mxu0
    %v366 = vadd.f32 %v91, %v365
    %v367 = vpop.f32.mrf.mxu0
    %v368 = vpop.f32.mrf.mxu0
    %v369 = vadd.f32 %v91, %v368
    %v370 = vpop.f32.mrf.mxu0
    %371 = vdwg.mxu0
    %v372 = vmax.f32 %v366, 0.0
    %v373 = vmax.f32 %v369, 0.0
    %v374 = vpack.c.bf16 %v373, %v372
    %v376 = vsel %vm231, %v374, 0
    %378 = vmatprep.subr.bf16.mxu0 0
    %379 = vmatpush1.bf16.msra.mxu0 0
    %380 = vmatprep.subr.bf16.mxu0 0
    %381 = vmatpush1.bf16.msra.mxu0 0
    %382 = vmatprep.subr.bf16.mxu0 0
    %383 = vmatpush1.bf16.msra.mxu0 0
    %384 = vmatprep.subr.bf16.mxu0 0
    %385 = vmatpush1.bf16.msra.mxu0 0
    %386 = vmatprep.subr.bf16.mxu0 0
    %387 = vmatpush1.bf16.msra.mxu0 0
    %388 = vmatprep.subr.bf16.mxu0 0
    %389 = vmatpush1.bf16.msra.mxu0 0
    %390 = vmatprep.subr.bf16.mxu0 0
    %391 = vmatpush1.bf16.msra.mxu0 %v228
    %392 = vmatprep.subr.bf16.mxu0 0
    %393 = vmatpush1.bf16.msra.mxu0 %v227
    %394 = vmatprep.subr.bf16.mxu0 0
    %395 = vmatpush2.bf16.msra.mxu0 0
    %396 = vmatprep.subr.bf16.mxu0 0
    %397 = vmatpush2.bf16.msra.mxu0 0
    %398 = vmatprep.subr.bf16.mxu0 0
    %399 = vmatpush2.bf16.msra.mxu0 0
    %400 = vmatprep.subr.bf16.mxu0 0
    %401 = vmatpush2.bf16.msra.mxu0 0
    %402 = vmatprep.subr.bf16.mxu0 0
    %403 = vmatpush2.bf16.msra.mxu0 0
    %404 = vmatprep.subr.bf16.mxu0 0
    %405 = vmatpush2.bf16.msra.mxu0 0
    %406 = vmatprep.subr.bf16.mxu0 0
    %407 = vmatpush2.bf16.msra.mxu0 0
    %408 = vmatprep.subr.bf16.mxu0 0
    %409 = vmatpush2.bf16.msra.mxu0 0
    %410 = vmatprep.mubr.bf16.mxu0 0
    %411 = vmatmul.mubr.bf16.gmra.mxu0 %v376
    %v412 = vpop.f32.mrf.mxu0
    %v413 = vadd.f32 0.0, %v412
    %v414 = vpop.f32.mrf.mxu0
    %v415 = vpop.f32.mrf.mxu0
    %v416 = vadd.f32 0.0, %v415
    %v417 = vpop.f32.mrf.mxu0
    %418 = vdwg.mxu0
    %v419 = vadd.f32 %v314, %v413
    %v420 = vadd.f32 %v317, %v416
    %s421 = scalar_lea.vmem %s0, 24
    %v422 = vld [vmem:[%s421] sm:$0xf]
    %v423 = vld [vmem:[%s421 + $0x4] sm:$0xf]
    %v426 = vunpack.c.l.b16 %v422
    %v427 = vunpack.c.l.b16 %v423
    %v428 = vpack.c.b16 %v427, %v426
    %v430 = vsel %vm112, %v428, 0
    %432 = vmatprep.subr.bf16.mxu0 0
    %433 = vmatpush1.bf16.msra.mxu0 0
    %434 = vmatprep.subr.bf16.mxu0 0
    %435 = vmatpush1.bf16.msra.mxu0 0
    %436 = vmatprep.subr.bf16.mxu0 0
    %437 = vmatpush1.bf16.msra.mxu0 0
    %438 = vmatprep.subr.bf16.mxu0 0
    %439 = vmatpush1.bf16.msra.mxu0 0
    %440 = vmatprep.subr.bf16.mxu0 0
    %441 = vmatpush1.bf16.msra.mxu0 0
    %442 = vmatprep.subr.bf16.mxu0 0
    %443 = vmatpush1.bf16.msra.mxu0 %v118
    %444 = vmatprep.subr.bf16.mxu0 0
    %445 = vmatpush1.bf16.msra.mxu0 %v108
    %446 = vmatprep.subr.bf16.mxu0 0
    %447 = vmatpush1.bf16.msra.mxu0 %v107
    %448 = vmatprep.subr.bf16.mxu0 0
    %449 = vmatpush2.bf16.msra.mxu0 0
    %450 = vmatprep.subr.bf16.mxu0 0
    %451 = vmatpush2.bf16.msra.mxu0 0
    %452 = vmatprep.subr.bf16.mxu0 0
    %453 = vmatpush2.bf16.msra.mxu0 0
    %454 = vmatprep.subr.bf16.mxu0 0
    %455 = vmatpush2.bf16.msra.mxu0 0
    %456 = vmatprep.subr.bf16.mxu0 0
    %457 = vmatpush2.bf16.msra.mxu0 0
    %458 = vmatprep.subr.bf16.mxu0 0
    %459 = vmatpush2.bf16.msra.mxu0 0
    %460 = vmatprep.subr.bf16.mxu0 0
    %461 = vmatpush2.bf16.msra.mxu0 0
    %462 = vmatprep.subr.bf16.mxu0 0
    %463 = vmatpush2.bf16.msra.mxu0 0
    %464 = vmatprep.mubr.bf16.mxu0 0
    %465 = vmatmul.mubr.bf16.gmra.mxu0 %v430
    %v466 = vpop.f32.mrf.mxu0
    %v467 = vadd.f32 %v91, %v466
    %v468 = vpop.f32.mrf.mxu0
    %v469 = vpop.f32.mrf.mxu0
    %v470 = vadd.f32 %v91, %v469
    %v471 = vpop.f32.mrf.mxu0
    %472 = vdwg.mxu0
    %v473 = vmax.f32 %v467, 0.0
    %v474 = vmax.f32 %v470, 0.0
    %v475 = vpack.c.bf16 %v474, %v473
    %v477 = vsel %vm231, %v475, 0
    %479 = vmatprep.subr.bf16.mxu0 0
    %480 = vmatpush1.bf16.msra.mxu0 0
    %481 = vmatprep.subr.bf16.mxu0 0
    %482 = vmatpush1.bf16.msra.mxu0 0
    %483 = vmatprep.subr.bf16.mxu0 0
    %484 = vmatpush1.bf16.msra.mxu0 0
    %485 = vmatprep.subr.bf16.mxu0 0
    %486 = vmatpush1.bf16.msra.mxu0 0
    %487 = vmatprep.subr.bf16.mxu0 0
    %488 = vmatpush1.bf16.msra.mxu0 0
    %489 = vmatprep.subr.bf16.mxu0 0
    %490 = vmatpush1.bf16.msra.mxu0 0
    %491 = vmatprep.subr.bf16.mxu0 0
    %492 = vmatpush1.bf16.msra.mxu0 %v228
    %493 = vmatprep.subr.bf16.mxu0 0
    %494 = vmatpush1.bf16.msra.mxu0 %v227
    %495 = vmatprep.subr.bf16.mxu0 0
    %496 = vmatpush2.bf16.msra.mxu0 0
    %497 = vmatprep.subr.bf16.mxu0 0
    %498 = vmatpush2.bf16.msra.mxu0 0
    %499 = vmatprep.subr.bf16.mxu0 0
    %500 = vmatpush2.bf16.msra.mxu0 0
    %501 = vmatprep.subr.bf16.mxu0 0
    %502 = vmatpush2.bf16.msra.mxu0 0
    %503 = vmatprep.subr.bf16.mxu0 0
    %504 = vmatpush2.bf16.msra.mxu0 0
    %505 = vmatprep.subr.bf16.mxu0 0
    %506 = vmatpush2.bf16.msra.mxu0 0
    %507 = vmatprep.subr.bf16.mxu0 0
    %508 = vmatpush2.bf16.msra.mxu0 0
    %509 = vmatprep.subr.bf16.mxu0 0
    %510 = vmatpush2.bf16.msra.mxu0 0
    %511 = vmatprep.mubr.bf16.mxu0 0
    %512 = vmatmul.mubr.bf16.gmra.mxu0 %v477
    %v513 = vpop.f32.mrf.mxu0
    %v514 = vadd.f32 0.0, %v513
    %v515 = vpop.f32.mrf.mxu0
    %v516 = vpop.f32.mrf.mxu0
    %v517 = vadd.f32 0.0, %v516
    %v518 = vpop.f32.mrf.mxu0
    %519 = vdwg.mxu0
    %v520 = vadd.f32 %v419, %v514
    %v521 = vadd.f32 %v420, %v517
    %v522 = vmul.f32 %v73, 4.0
    %v523 = vlaneseq
    %v524 = vshrl.u32 %v523, 7
    %v525 = vsub.s32 0, %v524
    %v526 = vrot.slane %v522, %v525
    %v527 = vadd.f32 %v520, %v526
    %v528 = vadd.f32 %v521, %v526
    %v529 = vld [vmem:[#allocation2] sm:$0xf]
    %v530 = vld [vmem:[#allocation2 + $0x4] sm:$0xf]
    %v531 = vld [vmem:[#allocation4] sm:$0xf]
    %v532 = vld [vmem:[#allocation4 + $0x4] sm:$0xf]
    %v533 = vpack.c.bf16 %v528, %v527
    %v534 = vld [vmem:[%s5] sm:$0xf]
    %v535 = vld [vmem:[%s5 + $0x4] sm:$0xf]
    %v536 = vld [vmem:[%s5 + $0x8] sm:$0xf]
    %v537 = vld [vmem:[%s5 + $0xc] sm:$0xf]
    %v538 = vld [vmem:[%s5 + $0x10] sm:$0x3]
    %v544 = vunpack.c.l.b16 %v534
    %v545 = vunpack.c.l.b16 %v535
    %v546 = vunpack.c.l.b16 %v536
    %v547 = vunpack.c.l.b16 %v537
    %v548 = vunpack.c.l.b16 %v538
    %v549 = vpack.c.b16 %v545, %v544
    %v550 = vpack.c.b16 %v547, %v546
    %v551 = vpack.c.b16 %v548, %v548
    %v555 = vsel %vm112, %v533, 0
    %v558 = vsel %vm116, %v551, 0
    %560 = vmatprep.subr.bf16.mxu0 0
    %561 = vmatpush1.bf16.msra.mxu0 0
    %562 = vmatprep.subr.bf16.mxu0 0
    %563 = vmatpush1.bf16.msra.mxu0 0
    %564 = vmatprep.subr.bf16.mxu0 0
    %565 = vmatpush1.bf16.msra.mxu0 0
    %566 = vmatprep.subr.bf16.mxu0 0
    %567 = vmatpush1.bf16.msra.mxu0 0
    %568 = vmatprep.subr.bf16.mxu0 0
    %569 = vmatpush1.bf16.msra.mxu0 0
    %570 = vmatprep.subr.bf16.mxu0 0
    %571 = vmatpush1.bf16.msra.mxu0 %v558
    %572 = vmatprep.subr.bf16.mxu0 0
    %573 = vmatpush1.bf16.msra.mxu0 %v550
    %574 = vmatprep.subr.bf16.mxu0 0
    %575 = vmatpush1.bf16.msra.mxu0 %v549
    %576 = vmatprep.subr.bf16.mxu0 0
    %577 = vmatpush2.bf16.msra.mxu0 0
    %578 = vmatprep.subr.bf16.mxu0 0
    %579 = vmatpush2.bf16.msra.mxu0 0
    %580 = vmatprep.subr.bf16.mxu0 0
    %581 = vmatpush2.bf16.msra.mxu0 0
    %582 = vmatprep.subr.bf16.mxu0 0
    %583 = vmatpush2.bf16.msra.mxu0 0
    %584 = vmatprep.subr.bf16.mxu0 0
    %585 = vmatpush2.bf16.msra.mxu0 0
    %586 = vmatprep.subr.bf16.mxu0 0
    %587 = vmatpush2.bf16.msra.mxu0 0
    %588 = vmatprep.subr.bf16.mxu0 0
    %589 = vmatpush2.bf16.msra.mxu0 0
    %590 = vmatprep.subr.bf16.mxu0 0
    %591 = vmatpush2.bf16.msra.mxu0 0
    %592 = vmatprep.mubr.bf16.mxu0 0
    %593 = vmatmul.mubr.bf16.gmra.mxu0 %v555
    %v594 = vpop.f32.mrf.mxu0
    %v595 = vadd.f32 0.0, %v594
    %v596 = vpop.f32.mrf.mxu0
    %v597 = vpop.f32.mrf.mxu0
    %v598 = vadd.f32 0.0, %v597
    %v599 = vpop.f32.mrf.mxu0
    %600 = vdwg.mxu0
    %v603 = vunpack.c.l.b16 %v529
    %v604 = vunpack.c.l.b16 %v530
    %v605 = vpack.c.b16 %v604, %v603
    %v608 = vunpack.c.l.b16 %v531
    %v609 = vunpack.c.l.b16 %v532
    %v610 = vpack.c.b16 %v609, %v608
    %vm612 = vcmask 130048
    %v614 = vsel %vm612, %v605, 0
    %616 = vmatprep.subr.bf16.mxu0 0
    %617 = vmatpush1.bf16.msra.mxu0 0
    %618 = vmatprep.subr.bf16.mxu0 0
    %619 = vmatpush1.bf16.msra.mxu0 0
    %620 = vmatprep.subr.bf16.mxu0 0
    %621 = vmatpush1.bf16.msra.mxu0 0
    %622 = vmatprep.subr.bf16.mxu0 0
    %623 = vmatpush1.bf16.msra.mxu0 0
    %624 = vmatprep.subr.bf16.mxu0 0
    %625 = vmatpush1.bf16.msra.mxu0 0
    %626 = vmatprep.subr.bf16.mxu0 0
    %627 = vmatpush1.bf16.msra.mxu0 0
    %628 = vmatprep.subr.bf16.mxu0 0
    %629 = vmatpush1.bf16.msra.mxu0 0
    %630 = vmatprep.subr.bf16.mxu0 0
    %631 = vmatpush1.bf16.msra.mxu0 %v610
    %632 = vmatprep.subr.bf16.mxu0 0
    %633 = vmatpush2.bf16.msra.mxu0 0
    %634 = vmatprep.subr.bf16.mxu0 0
    %635 = vmatpush2.bf16.msra.mxu0 0
    %636 = vmatprep.subr.bf16.mxu0 0
    %637 = vmatpush2.bf16.msra.mxu0 0
    %638 = vmatprep.subr.bf16.mxu0 0
    %639 = vmatpush2.bf16.msra.mxu0 0
    %640 = vmatprep.subr.bf16.mxu0 0
    %641 = vmatpush2.bf16.msra.mxu0 0
    %642 = vmatprep.subr.bf16.mxu0 0
    %643 = vmatpush2.bf16.msra.mxu0 0
    %644 = vmatprep.subr.bf16.mxu0 0
    %645 = vmatpush2.bf16.msra.mxu0 0
    %646 = vmatprep.subr.bf16.mxu0 0
    %647 = vmatpush2.bf16.msra.mxu0 0
    %648 = vmatprep.mubr.bf16.mxu0 0
    %649 = vmatmul.mubr.bf16.gmra.mxu0 %v614
    %v650 = vpop.f32.mrf.mxu0
    %v651 = vadd.f32 %v595, %v650
    %v652 = vpop.f32.mrf.mxu0
    %v653 = vpop.f32.mrf.mxu0
    %v654 = vadd.f32 %v598, %v653
    %v655 = vpop.f32.mrf.mxu0
    %656 = vdwg.mxu0
    %v657 = vlaneseq
    %v658 = vshrl.u32 %v657, 7
    %v659 = vsub.s32 0, %v658
    %v660 = vrot.slane %v74, %v659
    %v661 = vadd.f32 %v651, %v660
    %v662 = vadd.f32 %v654, %v660
    %v663 = vmax.f32 %v661, 0.0
    %v664 = vmax.f32 %v662, 0.0
    %v665 = vpack.c.bf16 %v664, %v663
    %v666 = vld [vmem:[%s6] sm:$0xf]
    %v667 = vld [vmem:[%s6 + $0x4] sm:$0xf]
    %v668 = vld [vmem:[%s6 + $0x8] sm:$0xf]
    %v669 = vld [vmem:[%s6 + $0xc] sm:$0xf]
    %v670 = vlaneseq
    %v671 = vshrl.u32 %v670, 7
    %v672 = vsub.s32 0, %v671
    %v673 = vrot.slane %v75, %v672
    %v678 = vunpack.c.l.b16 %v666
    %v679 = vunpack.c.l.b16 %v667
    %v680 = vunpack.c.l.b16 %v668
    %v681 = vunpack.c.l.b16 %v669
    %v682 = vpack.c.b16 %v679, %v678
    %v683 = vpack.c.b16 %v681, %v680
    %v687 = vsel %vm231, %v665, 0
    %689 = vmatprep.subr.bf16.mxu0 0
    %690 = vmatpush1.bf16.msra.mxu0 0
    %691 = vmatprep.subr.bf16.mxu0 0
    %692 = vmatpush1.bf16.msra.mxu0 0
    %693 = vmatprep.subr.bf16.mxu0 0
    %694 = vmatpush1.bf16.msra.mxu0 0
    %695 = vmatprep.subr.bf16.mxu0 0
    %696 = vmatpush1.bf16.msra.mxu0 0
    %697 = vmatprep.subr.bf16.mxu0 0
    %698 = vmatpush1.bf16.msra.mxu0 0
    %699 = vmatprep.subr.bf16.mxu0 0
    %700 = vmatpush1.bf16.msra.mxu0 0
    %701 = vmatprep.subr.bf16.mxu0 0
    %702 = vmatpush1.bf16.msra.mxu0 %v683
    %703 = vmatprep.subr.bf16.mxu0 0
    %704 = vmatpush1.bf16.msra.mxu0 %v682
    %705 = vmatprep.subr.bf16.mxu0 0
    %706 = vmatpush2.bf16.msra.mxu0 0
    %707 = vmatprep.subr.bf16.mxu0 0
    %708 = vmatpush2.bf16.msra.mxu0 0
    %709 = vmatprep.subr.bf16.mxu0 0
    %710 = vmatpush2.bf16.msra.mxu0 0
    %711 = vmatprep.subr.bf16.mxu0 0
    %712 = vmatpush2.bf16.msra.mxu0 0
    %713 = vmatprep.subr.bf16.mxu0 0
    %714 = vmatpush2.bf16.msra.mxu0 0
    %715 = vmatprep.subr.bf16.mxu0 0
    %716 = vmatpush2.bf16.msra.mxu0 0
    %717 = vmatprep.subr.bf16.mxu0 0
    %718 = vmatpush2.bf16.msra.mxu0 0
    %719 = vmatprep.subr.bf16.mxu0 0
    %720 = vmatpush2.bf16.msra.mxu0 0
    %721 = vmatprep.mubr.bf16.mxu0 0
    %722 = vmatmul.mubr.bf16.gmra.mxu0 %v687
    %v723 = vpop.f32.mrf.mxu0
    %v724 = vadd.f32 %v673, %v723
    %v725 = vpop.f32.mrf.mxu0
    %v726 = vpop.f32.mrf.mxu0
    %v727 = vadd.f32 %v673, %v726
    %v728 = vpop.f32.mrf.mxu0
    %729 = vdwg.mxu0
    %v730 = vmax.f32 %v724, 0.0
    %v731 = vmax.f32 %v727, 0.0
    %v732 = vld [vmem:[%s7] sm:$0x1]
    %v734 = vlaneseq
    %v735 = vshrl.u32 %v734, 7
    %v736 = vsub.s32 0, %v735
    %v737 = vrot.slane %v732, %v736
    %v739 = vmul.f32 %v730, %v737
    %v740 = vmul.f32 %v731, %v737
    %v741 = vsel %vm231, %v739, 0.0
    %742 = vadd.xlane.f32.xlu0 %v741
    %v743 = vpop.xlane.xlu0 %742
    %v744 = vsel %vm231, %v740, 0.0
    %745 = vadd.xlane.f32.xlu0 %v744
    %v746 = vpop.xlane.xlu0 %745
    %v747 = vlaneseq
    %v748 = vshrl.u32 %v747, 7
    %v749 = vsub.s32 0, %v748
    %v750 = vrot.slane %v76, %v749
    %v751 = vadd.f32 %v743, %v750
    %v752 = vadd.f32 %v746, %v750
    %vm753 = vcmask 7168
    %754 = vst.msk [vmem:[%s9] sm:$0xff] %vm753, %v751
    %755 = vst.msk [vmem:[%s9 + $0x8] sm:$0xff] %vm753, %v752
    // Predicated region
    $region50: #{tpu_custom_call.1} parent=1 // pred_check
      _
    $region51: #{tpu_custom_call.1} parent=1 // pred_check_branch
      %757 = sbr.rel (0) target = $region53
    $region52: #{tpu_custom_call.1} parent=1 // pred_region
      _
    $region53: #{tpu_custom_call.1} parent=1 // pred_fallthru
      _
    // Predicated region
    $region54: #{tpu_custom_call.1} parent=1 // pred_check
      _
    $region55: #{tpu_custom_call.1} parent=1 // pred_check_branch
      %759 = sbr.rel (0) target = $region57
    $region56: #{tpu_custom_call.1} parent=1 // pred_region
      _
    $region57: #{tpu_custom_call.1} parent=1 // pred_fallthru
      _
    %760 = vsyncpa [#allocation3], 1
    %761 = vsyncpa [#allocation5], 1

</llo_original>
